<compile_context>
chip_gen: v7x
topology: tpu7x:2x2x1
jax: 0.10.0
libtpu: 0.0.40
codegen_flags: <defaults>
</compile_context>

<pallas_src>
import functools

import jax
import jax.numpy as jnp
from jax.experimental import pallas as pl
from jax.experimental.pallas import tpu as pltpu


def _make_divisible(ch, divisor=8, min_ch=None):
    if min_ch is None:
        min_ch = divisor
    new_ch = max(min_ch, int(ch + divisor / 2)) // divisor * divisor
    if new_ch < 0.9 * ch:
        new_ch += divisor
    return new_ch


def _round_up(v, m):
    return (v + m - 1) // m * m


def _se_kernel(x_ref, w1_ref, b1_ref, w2_ref, b2_ref, o_ref, *, hw, chunk):
    # x_ref: (Nb, C, HW) block — HW on lanes, C on sublanes (NCHW-native).
    nb, c = x_ref.shape[0], x_ref.shape[1]

    # adaptive_avg_pool2d((1,1)) == mean over spatial positions.
    # Accumulate in f32 over static lane-chunks (avoids a full-block f32
    # temp for bf16/fp8 inputs; for f32 the astype is a no-op).
    acc = jnp.zeros((nb, c), jnp.float32)
    for st in range(0, hw, chunk):
        sz = min(chunk, hw - st)
        blk = x_ref[:, :, pl.ds(st, sz)]
        acc = acc + jnp.sum(blk.astype(jnp.float32), axis=-1)
    mean = acc * jnp.float32(1.0 / hw)                              # (Nb, C)

    # fc1: 1x1 conv == matmul (Nb,C) @ (C,Cs) + bias, then ReLU
    h = jnp.dot(mean, w1_ref[...],
                preferred_element_type=jnp.float32) + b1_ref[...]   # (Nb, Cs)
    h = jnp.maximum(h, 0.0)

    # fc2: 1x1 conv == matmul (Nb,Cs) @ (Cs,C) + bias
    s = jnp.dot(h, w2_ref[...],
                preferred_element_type=jnp.float32) + b2_ref[...]   # (Nb, C)

    # hardsigmoid: clamp(x + 3, 0, 6) / 6
    s = jnp.clip(s * (1.0 / 6.0) + 0.5, 0.0, 1.0)

    # Per-channel rescale, broadcast along the lane (HW) axis; native dtype.
    o_ref[...] = (x_ref[...] * s[:, :, None].astype(o_ref.dtype)).astype(
        o_ref.dtype)


def squeeze_excitation(x_nchw, w1, b1, w2, b2):
    """x_nchw: (N, C, H, W); w1: (C, Cs); b1: (Cs,); w2: (Cs, C); b2: (C,)."""
    N, C, H, W = x_nchw.shape
    Cs = w1.shape[1]
    HW = H * W

    # NCHW-native: (N, C, HW) is a free reshape (no relayout). HW -> lanes.
    x_nch = x_nchw.reshape(N, C, HW)
    b1_2d = b1.reshape(1, Cs)
    b2_2d = b2.reshape(1, C)

    # ---- padded-tile accounting (lane = 128, sublane depends on dtype) ----
    itemsize = jnp.dtype(x_nchw.dtype).itemsize
    hw_pad = _round_up(HW, 128)
    sub_mult = max(8, 32 // itemsize)          # f32:8, bf16:16, int8/fp8:32
    c_pad = _round_up(C, sub_mult)
    per_image = c_pad * hw_pad * itemsize      # padded bytes of one image

    # ---- generation-aware block-size / VMEM budget ----
    try:
        vmem_cap = int(pltpu.get_tpu_info().vmem_capacity_bytes)
    except Exception:
        vmem_cap = 64 << 20
    if vmem_cap <= (64 << 20):                 # v7x-class: 64 MiB per TC
        target_block, footprint_cap, limit_cap = 4 << 20, 40 << 20, 48 << 20
    else:                                      # v5e / v6e: 128 MiB physical
        target_block, footprint_cap, limit_cap = 8 << 20, 64 << 20, 80 << 20

    # Lane-chunk for the f32 spatial reduce (bounds the f32 temp size).
    chunk = min(HW, max(512, _round_up(pl.cdiv(HW, 8), 128)))

    w_item = max(jnp.dtype(w1.dtype).itemsize, jnp.dtype(w2.dtype).itemsize)

    def footprint(nb_):
        blk = nb_ * per_image                                  # one x block
        f32_tmp = nb_ * _round_up(C, 8) * min(_round_up(chunk, 128),
                                              hw_pad) * 4
        wts = 2 * w_item * (_round_up(C, 8) * _round_up(Cs, 128)
                            + _round_up(Cs, 8) * _round_up(C, 128)
                            + 2 * 8 * 128)
        # 2x in + 2x out double buffers + f32 chunk temp + weights + slack.
        return 4 * blk + f32_tmp + wts + (1 << 20)

    # Largest nb whose x-block hits the target size; shrink if the total
    # double-buffered footprint would still blow the budget.
    nb = max(1, min(N, target_block // max(per_image, 1)))
    while nb > 1 and footprint(nb) > footprint_cap:
        nb -= 1

    # TODO(synk): two-pass reduce+scale fallback (HW tiled on an 'arbitrary'
    # grid axis) for shapes where a single image's padded (C, HW) slab does
    # not fit the scoped VMEM budget is not implemented here.

    grid_n = pl.cdiv(N, nb)
    # Megacore balance (v7x: 2 TCs share the 'parallel' batch axis):
    #  - split a single large block in two when there is work to share;
    #  - prefer an even step count for small grids.
    if grid_n == 1 and N >= 2 and nb * per_image >= (2 << 20):
        nb = pl.cdiv(N, 2)
        grid_n = pl.cdiv(N, nb)
    if 1 < grid_n < 8 and grid_n % 2 == 1:
        for cand in range(nb, 0, -1):
            if pl.cdiv(N, cand) % 2 == 0:
                nb = cand
                grid_n = pl.cdiv(N, cand)
                break

    vmem_limit = int(min(limit_cap, max(footprint(nb) + (2 << 20), 16 << 20)))

    kernel = functools.partial(_se_kernel, hw=HW, chunk=chunk)

    out = pl.pallas_call(
        kernel,
        out_shape=jax.ShapeDtypeStruct((N, C, HW), x_nchw.dtype),
        grid_spec=pltpu.PrefetchScalarGridSpec(
            num_scalar_prefetch=0,
            grid=(grid_n,),
            in_specs=[
                pl.BlockSpec((nb, C, HW), lambda n: (n, 0, 0)),   # x
                pl.BlockSpec((C, Cs), lambda n: (0, 0)),          # w1
                pl.BlockSpec((1, Cs), lambda n: (0, 0)),          # b1
                pl.BlockSpec((Cs, C), lambda n: (0, 0)),          # w2
                pl.BlockSpec((1, C), lambda n: (0, 0)),           # b2
            ],
            out_specs=pl.BlockSpec((nb, C, HW), lambda n: (n, 0, 0)),
        ),
        compiler_params=pltpu.CompilerParams(
            dimension_semantics=("parallel",),
            vmem_limit_bytes=vmem_limit),
    )(x_nch, w1, b1_2d, w2, b2_2d)

    # Free reshape back to NCHW (no data movement).
    return out.reshape(N, C, H, W)


def _reference(x_nchw, w1, b1, w2, b2):
    mean = jnp.mean(x_nchw.astype(jnp.float32), axis=(2, 3))   # (N, C)
    h = jnp.maximum(mean @ w1 + b1, 0.0)                       # (N, Cs)
    s = h @ w2 + b2                                            # (N, C)
    s = jnp.clip(s / 6.0 + 0.5, 0.0, 1.0)
    return (x_nchw * s[:, :, None, None].astype(x_nchw.dtype)).astype(
        x_nchw.dtype)


if __name__ == "__main__":
    # Small, forward-consistent shapes (the module's 1x1 convs become the
    # (C, Cs) / (Cs, C) matmuls below).
    N, C, H, W = 3, 64, 16, 16
    Cs = _make_divisible(C // 4, 8)                            # 16

    key = jax.random.PRNGKey(0)
    kx, k1, k2, k3, k4 = jax.random.split(key, 5)

    x = jax.random.normal(kx, (N, C, H, W), dtype=jnp.float32)
    # Deterministic synthetic params (Conv2d 1x1 weights flattened to matmuls).
    w1 = jax.random.normal(k1, (C, Cs), dtype=jnp.float32) * 0.05
    b1 = jax.random.normal(k2, (Cs,), dtype=jnp.float32) * 0.05
    w2 = jax.random.normal(k3, (Cs, C), dtype=jnp.float32) * 0.05
    b2 = jax.random.normal(k4, (C,), dtype=jnp.float32) * 0.05

    out = squeeze_excitation(x, w1, b1, w2, b2)
    out = jax.block_until_ready(out)

    ref = _reference(x, w1, b1, w2, b2)
    assert out.shape == (N, C, H, W)
    assert jnp.allclose(out, ref, atol=1e-5, rtol=1e-5)
    print("KERNEL_OK")
</pallas_src>

<mosaic_0001>
module attributes {stable_mosaic.version = 11 : i64} {
  func.func @_se_kernel(%arg0: i32, %arg1: memref<3x64x256xf32, #tpu.memory_space<vmem>>, %arg2: memref<64x16xf32, #tpu.memory_space<vmem>>, %arg3: memref<1x16xf32, #tpu.memory_space<vmem>>, %arg4: memref<16x64xf32, #tpu.memory_space<vmem>>, %arg5: memref<1x64xf32, #tpu.memory_space<vmem>>, %arg6: memref<3x64x256xf32, #tpu.memory_space<vmem>>) attributes {dimension_semantics = [#tpu.dimension_semantics<parallel>], iteration_bounds = array<i64: 1>, scalar_prefetch = 0 : i64, scratch_operands = 0 : i64, tpu.core_type = #tpu.core_type<tc>, window_params = [{transform_indices = @transform_0, window_bounds = array<i64: 3, 64, 256>}, {pipeline_mode = #tpu.pipeline_mode<synchronous>, transform_indices = @transform_1, window_bounds = array<i64: 64, 16>}, {pipeline_mode = #tpu.pipeline_mode<synchronous>, transform_indices = @transform_2, window_bounds = array<i64: 1, 16>}, {pipeline_mode = #tpu.pipeline_mode<synchronous>, transform_indices = @transform_3, window_bounds = array<i64: 16, 64>}, {pipeline_mode = #tpu.pipeline_mode<synchronous>, transform_indices = @transform_4, window_bounds = array<i64: 1, 64>}, {transform_indices = @transform_5, window_bounds = array<i64: 3, 64, 256>}]} {
    %cst = arith.constant 0.000000e+00 : f32
    %0 = vector.broadcast %cst : f32 to vector<3x64xf32>
    %c0 = arith.constant 0 : index
    %c0_0 = arith.constant 0 : index
    %c0_1 = arith.constant 0 : index
    %1 = vector.load %arg1[%c0, %c0_0, %c0_1] : memref<3x64x256xf32, #tpu.memory_space<vmem>>, vector<3x64x256xf32>
    %cst_2 = arith.constant dense<0.000000e+00> : vector<3x64xf32>
    %2 = vector.multi_reduction <add>, %1, %cst_2 [2] : vector<3x64x256xf32> to vector<3x64xf32>
    %3 = arith.addf %0, %2 : vector<3x64xf32>
    %cst_3 = arith.constant 3.906250e-03 : f32
    %4 = vector.broadcast %cst_3 : f32 to vector<3x64xf32>
    %5 = arith.mulf %3, %4 : vector<3x64xf32>
    %c0_4 = arith.constant 0 : index
    %c0_5 = arith.constant 0 : index
    %6 = vector.load %arg2[%c0_4, %c0_5] : memref<64x16xf32, #tpu.memory_space<vmem>>, vector<64x16xf32>
    %cst_6 = arith.constant dense<0.000000e+00> : vector<3x16xf32>
    %7 = tpu.matmul %5, %6, %cst_6 {dimension_numbers = #tpu.dot_dimension_numbers<[1], [0], [0], [1], [0, 0, 1, 1], [], []>} : vector<3x64xf32>, vector<64x16xf32>, vector<3x16xf32> -> vector<3x16xf32>
    %c0_7 = arith.constant 0 : index
    %c0_8 = arith.constant 0 : index
    %8 = vector.load %arg3[%c0_7, %c0_8] : memref<1x16xf32, #tpu.memory_space<vmem>>, vector<1x16xf32>
    %9 = vector.broadcast %8 : vector<1x16xf32> to vector<3x16xf32>
    %10 = arith.addf %7, %9 : vector<3x16xf32>
    %cst_9 = arith.constant 0.000000e+00 : f32
    %11 = vector.broadcast %cst_9 : f32 to vector<3x16xf32>
    %12 = arith.maximumf %10, %11 : vector<3x16xf32>
    %c0_10 = arith.constant 0 : index
    %c0_11 = arith.constant 0 : index
    %13 = vector.load %arg4[%c0_10, %c0_11] : memref<16x64xf32, #tpu.memory_space<vmem>>, vector<16x64xf32>
    %cst_12 = arith.constant dense<0.000000e+00> : vector<3x64xf32>
    %14 = tpu.matmul %12, %13, %cst_12 {dimension_numbers = #tpu.dot_dimension_numbers<[1], [0], [0], [1], [0, 0, 1, 1], [], []>} : vector<3x16xf32>, vector<16x64xf32>, vector<3x64xf32> -> vector<3x64xf32>
    %c0_13 = arith.constant 0 : index
    %c0_14 = arith.constant 0 : index
    %15 = vector.load %arg5[%c0_13, %c0_14] : memref<1x64xf32, #tpu.memory_space<vmem>>, vector<1x64xf32>
    %16 = vector.broadcast %15 : vector<1x64xf32> to vector<3x64xf32>
    %17 = arith.addf %14, %16 : vector<3x64xf32>
    %cst_15 = arith.constant 0.166666672 : f32
    %18 = vector.broadcast %cst_15 : f32 to vector<3x64xf32>
    %19 = arith.mulf %17, %18 : vector<3x64xf32>
    %cst_16 = arith.constant 5.000000e-01 : f32
    %20 = vector.broadcast %cst_16 : f32 to vector<3x64xf32>
    %21 = arith.addf %19, %20 : vector<3x64xf32>
    %cst_17 = arith.constant 0.000000e+00 : f32
    %cst_18 = arith.constant 1.000000e+00 : f32
    %22 = vector.broadcast %cst_17 : f32 to vector<3x64xf32>
    %23 = arith.maximumf %22, %21 : vector<3x64xf32>
    %24 = vector.broadcast %cst_18 : f32 to vector<3x64xf32>
    %25 = arith.minimumf %24, %23 : vector<3x64xf32>
    %c0_19 = arith.constant 0 : index
    %c0_20 = arith.constant 0 : index
    %c0_21 = arith.constant 0 : index
    %26 = vector.load %arg1[%c0_19, %c0_20, %c0_21] : memref<3x64x256xf32, #tpu.memory_space<vmem>>, vector<3x64x256xf32>
    %27 = vector.shape_cast %25 : vector<3x64xf32> to vector<3x64x1xf32>
    %28 = vector.broadcast %27 : vector<3x64x1xf32> to vector<3x64x256xf32>
    %29 = arith.mulf %26, %28 : vector<3x64x256xf32>
    %c0_22 = arith.constant 0 : index
    %c0_23 = arith.constant 0 : index
    %c0_24 = arith.constant 0 : index
    %30 = vector.load %arg6[%c0_22, %c0_23, %c0_24] : memref<3x64x256xf32, #tpu.memory_space<vmem>>, vector<3x64x256xf32>
    tpu.vector_store %arg6[%c0_22, %c0_23, %c0_24], %29 {strides = array<i32>} : memref<3x64x256xf32, #tpu.memory_space<vmem>>, vector<3x64x256xf32>,
    return
  }
  func.func @transform_0(%arg0: i32) -> (i32, i32, i32) {
    %c0_i32 = arith.constant 0 : i32
    %c0_i32_0 = arith.constant 0 : i32
    %c0_i32_1 = arith.constant 0 : i32
    return %arg0, %c0_i32, %c0_i32_0 : i32, i32, i32
  }
  func.func @transform_1(%arg0: i32) -> (i32, i32) {
    %c0_i32 = arith.constant 0 : i32
    %c0_i32_0 = arith.constant 0 : i32
    %c0_i32_1 = arith.constant 0 : i32
    return %c0_i32, %c0_i32_0 : i32, i32
  }
  func.func @transform_2(%arg0: i32) -> (i32, i32) {
    %c0_i32 = arith.constant 0 : i32
    %c0_i32_0 = arith.constant 0 : i32
    %c0_i32_1 = arith.constant 0 : i32
    return %c0_i32, %c0_i32_0 : i32, i32
  }
  func.func @transform_3(%arg0: i32) -> (i32, i32) {
    %c0_i32 = arith.constant 0 : i32
    %c0_i32_0 = arith.constant 0 : i32
    %c0_i32_1 = arith.constant 0 : i32
    return %c0_i32, %c0_i32_0 : i32, i32
  }
  func.func @transform_4(%arg0: i32) -> (i32, i32) {
    %c0_i32 = arith.constant 0 : i32
    %c0_i32_0 = arith.constant 0 : i32
    %c0_i32_1 = arith.constant 0 : i32
    return %c0_i32, %c0_i32_0 : i32, i32
  }
  func.func @transform_5(%arg0: i32) -> (i32, i32, i32) {
    %c0_i32 = arith.constant 0 : i32
    %c0_i32_0 = arith.constant 0 : i32
    %c0_i32_1 = arith.constant 0 : i32
    return %arg0, %c0_i32, %c0_i32_0 : i32, i32, i32
  }
}

</mosaic_0001>

<llo_original>
// kernel: tpu_custom_call.1
$region0: #{tpu_custom_call.1}
  #allocation0 [shape = 'u32[]', space=smem, size = 0x4, offset = 0x4, fixed_abs, tag = 'smem constant byte address 0x4 - core index']
  #allocation1 [shape = 'u32[144,128]{1,0:T(1,128)}', space=vmem, size = 0x12000, scoped, tag = 'internal scratch']
  %s0 = inlined_call_operand.hbm [shape: f32[3,64,256], index: 0, kind: input, shape index: {}]
  %s1 = inlined_call_operand.vmem [shape: f32[64,16], index: 1, kind: input, shape index: {}]
  %s2 = inlined_call_operand.vmem [shape: f32[1,16], index: 2, kind: input, shape index: {}]
  %s3 = inlined_call_operand.vmem [shape: f32[16,64], index: 3, kind: input, shape index: {}]
  %s4 = inlined_call_operand.vmem [shape: f32[1,64], index: 4, kind: input, shape index: {}]
  %s5 = inlined_call_operand.hbm [shape: f32[3,64,256], index: 5, kind: output, shape index: {}]
  %s6 = sld [smem:[#allocation0]]
  $region34: #{tpu_custom_call.1} parent=0
    _
  %s8 = ssub.s32 1, %s6
  %s9 = scalar_select 0, %s8, %s6
  $region1: #{tpu_custom_call.1} parent=0
    #allocation2 [shape = 'u8[196608]{0}', space=vmem, size = 0x30000, scoped, tag = 'input window, operand 0, single buffered']
    #allocation3 [shape = 's32[1]{0}', space=sflag, size = 0x4, scoped, tag = 'scoped memory for tpu_custom_call.1']
    #allocation4 [shape = 's32[1]{0}', space=sflag, size = 0x4, scoped, tag = 'scoped memory for tpu_custom_call.1']
    #allocation5 [shape = 'u8[196608]{0}', space=vmem, size = 0x30000, scoped, tag = 'output window, operand 0, single buffered']
    %10 = vsyncpa [#allocation3], 0
    %11 = vsyncpa [#allocation4], 0
    // Predicated region
    $region2: #{tpu_custom_call.1} parent=1 // pred_check
      _
    $region3: #{tpu_custom_call.1} parent=1 // pred_check_branch
      %13 = sbr.rel (0) target = $region5
    $region4: #{tpu_custom_call.1} parent=1 // pred_region
      %s15 = ssub.s32 6144, 6144
      %16 = vsyncadd [#allocation3], %s15
      %s17 = sshll.u32 [#allocation2], 4
      %s18 = int_to_ptr.vmem [resolvable:$true] %s17
      %23 = dma.hbm_to_vmem [thread:$0]  %s0, 6144, %s18, [#allocation3], 256, 256, 16
    $region5: #{tpu_custom_call.1} parent=1 // pred_fallthru
      _
    // Predicated region
    $region6: #{tpu_custom_call.1} parent=1 // pred_check
      _
    $region7: #{tpu_custom_call.1} parent=1 // pred_check_branch
      %25 = sbr.rel (0) target = $region9
    $region8: #{tpu_custom_call.1} parent=1 // pred_region
      _
    $region9: #{tpu_custom_call.1} parent=1 // pred_fallthru
      _
    // Predicated region
    $region10: #{tpu_custom_call.1} parent=1 // pred_check
      _
    $region11: #{tpu_custom_call.1} parent=1 // pred_check_branch
      %27 = sbr.rel (0) target = $region13
    $region12: #{tpu_custom_call.1} parent=1 // pred_region
      _
    $region13: #{tpu_custom_call.1} parent=1 // pred_fallthru
      _
    // Predicated region
    $region14: #{tpu_custom_call.1} parent=1 // pred_check
      _
    $region15: #{tpu_custom_call.1} parent=1 // pred_check_branch
      %29 = sbr.rel (0) target = $region17
    $region16: #{tpu_custom_call.1} parent=1 // pred_region
      _
    $region17: #{tpu_custom_call.1} parent=1 // pred_fallthru
      _
    // Predicated region
    $region18: #{tpu_custom_call.1} parent=1 // pred_check
      _
    $region19: #{tpu_custom_call.1} parent=1 // pred_check_branch
      %31 = sbr.rel (0) target = $region21
    $region20: #{tpu_custom_call.1} parent=1 // pred_region
      _
    $region21: #{tpu_custom_call.1} parent=1 // pred_fallthru
      _
    // Predicated region
    $region22: #{tpu_custom_call.1} parent=1 // pred_check
      _
    $region23: #{tpu_custom_call.1} parent=1 // pred_check_branch
      %33 = sbr.rel (0) target = $region25
    $region24: #{tpu_custom_call.1} parent=1 // pred_region
      %34 = dma.done [#allocation3], 6144
    $region25: #{tpu_custom_call.1} parent=1 // pred_fallthru
      _
    %v35 = vld [vmem:[#allocation2] sm:$0xff]
    %v36 = vld [vmem:[#allocation2 + $0x8] sm:$0xff]
    %v37 = vld [vmem:[#allocation2 + $0x10] sm:$0xff]
    %v38 = vld [vmem:[#allocation2 + $0x18] sm:$0xff]
    %v39 = vld [vmem:[#allocation2 + $0x20] sm:$0xff]
    %v40 = vld [vmem:[#allocation2 + $0x28] sm:$0xff]
    %v41 = vld [vmem:[#allocation2 + $0x30] sm:$0xff]
    %v42 = vld [vmem:[#allocation2 + $0x38] sm:$0xff]
    %v43 = vld [vmem:[#allocation2 + $0x40] sm:$0xff]
    %v44 = vld [vmem:[#allocation2 + $0x48] sm:$0xff]
    %v45 = vld [vmem:[#allocation2 + $0x50] sm:$0xff]
    %v46 = vld [vmem:[#allocation2 + $0x58] sm:$0xff]
    %v47 = vld [vmem:[#allocation2 + $0x60] sm:$0xff]
    %v48 = vld [vmem:[#allocation2 + $0x68] sm:$0xff]
    %v49 = vld [vmem:[#allocation2 + $0x70] sm:$0xff]
    %v50 = vld [vmem:[#allocation2 + $0x78] sm:$0xff]
    %v51 = vld [vmem:[#allocation2 + $0x80] sm:$0xff]
    %v52 = vld [vmem:[#allocation2 + $0x88] sm:$0xff]
    %v53 = vld [vmem:[#allocation2 + $0x90] sm:$0xff]
    %v54 = vld [vmem:[#allocation2 + $0x98] sm:$0xff]
    %v55 = vld [vmem:[#allocation2 + $0xa0] sm:$0xff]
    %v56 = vld [vmem:[#allocation2 + $0xa8] sm:$0xff]
    %v57 = vld [vmem:[#allocation2 + $0xb0] sm:$0xff]
    %v58 = vld [vmem:[#allocation2 + $0xb8] sm:$0xff]
    %v59 = vld [vmem:[#allocation2 + $0xc0] sm:$0xff]
    %v60 = vld [vmem:[#allocation2 + $0xc8] sm:$0xff]
    %v61 = vld [vmem:[#allocation2 + $0xd0] sm:$0xff]
    %v62 = vld [vmem:[#allocation2 + $0xd8] sm:$0xff]
    %v63 = vld [vmem:[#allocation2 + $0xe0] sm:$0xff]
    %v64 = vld [vmem:[#allocation2 + $0xe8] sm:$0xff]
    %v65 = vld [vmem:[#allocation2 + $0xf0] sm:$0xff]
    %v66 = vld [vmem:[#allocation2 + $0xf8] sm:$0xff]
    %v67 = vld [vmem:[#allocation2 + $0x100] sm:$0xff]
    %v68 = vld [vmem:[#allocation2 + $0x108] sm:$0xff]
    %v69 = vld [vmem:[#allocation2 + $0x110] sm:$0xff]
    %v70 = vld [vmem:[#allocation2 + $0x118] sm:$0xff]
    %v71 = vld [vmem:[#allocation2 + $0x120] sm:$0xff]
    %v72 = vld [vmem:[#allocation2 + $0x128] sm:$0xff]
    %v73 = vld [vmem:[#allocation2 + $0x130] sm:$0xff]
    %v74 = vld [vmem:[#allocation2 + $0x138] sm:$0xff]
    %v75 = vld [vmem:[#allocation2 + $0x140] sm:$0xff]
    %v76 = vld [vmem:[#allocation2 + $0x148] sm:$0xff]
    %v77 = vld [vmem:[#allocation2 + $0x150] sm:$0xff]
    %v78 = vld [vmem:[#allocation2 + $0x158] sm:$0xff]
    %v79 = vld [vmem:[#allocation2 + $0x160] sm:$0xff]
    %v80 = vld [vmem:[#allocation2 + $0x168] sm:$0xff]
    %v81 = vld [vmem:[#allocation2 + $0x170] sm:$0xff]
    %v82 = vld [vmem:[#allocation2 + $0x178] sm:$0xff]
    %v83 = vadd.f32 %v35, %v36
    %84 = vadd.xlane.f32.xlu0 %v83
    %v85 = vpop.xlane.xlu0 %84
    %v86 = vadd.f32 %v37, %v38
    %87 = vadd.xlane.f32.xlu0 %v86
    %v88 = vpop.xlane.xlu0 %87
    %v89 = vadd.f32 %v39, %v40
    %90 = vadd.xlane.f32.xlu0 %v89
    %v91 = vpop.xlane.xlu0 %90
    %v92 = vadd.f32 %v41, %v42
    %93 = vadd.xlane.f32.xlu0 %v92
    %v94 = vpop.xlane.xlu0 %93
    %v95 = vadd.f32 %v43, %v44
    %96 = vadd.xlane.f32.xlu0 %v95
    %v97 = vpop.xlane.xlu0 %96
    %v98 = vadd.f32 %v45, %v46
    %99 = vadd.xlane.f32.xlu0 %v98
    %v100 = vpop.xlane.xlu0 %99
    %v101 = vadd.f32 %v47, %v48
    %102 = vadd.xlane.f32.xlu0 %v101
    %v103 = vpop.xlane.xlu0 %102
    %v104 = vadd.f32 %v49, %v50
    %105 = vadd.xlane.f32.xlu0 %v104
    %v106 = vpop.xlane.xlu0 %105
    %v107 = vadd.f32 %v51, %v52
    %108 = vadd.xlane.f32.xlu0 %v107
    %v109 = vpop.xlane.xlu0 %108
    %v110 = vadd.f32 %v53, %v54
    %111 = vadd.xlane.f32.xlu0 %v110
    %v112 = vpop.xlane.xlu0 %111
    %v113 = vadd.f32 %v55, %v56
    %114 = vadd.xlane.f32.xlu0 %v113
    %v115 = vpop.xlane.xlu0 %114
    %v116 = vadd.f32 %v57, %v58
    %117 = vadd.xlane.f32.xlu0 %v116
    %v118 = vpop.xlane.xlu0 %117
    %v119 = vadd.f32 %v59, %v60
    %120 = vadd.xlane.f32.xlu0 %v119
    %v121 = vpop.xlane.xlu0 %120
    %v122 = vadd.f32 %v61, %v62
    %123 = vadd.xlane.f32.xlu0 %v122
    %v124 = vpop.xlane.xlu0 %123
    %v125 = vadd.f32 %v63, %v64
    %126 = vadd.xlane.f32.xlu0 %v125
    %v127 = vpop.xlane.xlu0 %126
    %v128 = vadd.f32 %v65, %v66
    %129 = vadd.xlane.f32.xlu0 %v128
    %v130 = vpop.xlane.xlu0 %129
    %v131 = vadd.f32 %v67, %v68
    %132 = vadd.xlane.f32.xlu0 %v131
    %v133 = vpop.xlane.xlu0 %132
    %v134 = vadd.f32 %v69, %v70
    %135 = vadd.xlane.f32.xlu0 %v134
    %v136 = vpop.xlane.xlu0 %135
    %v137 = vadd.f32 %v71, %v72
    %138 = vadd.xlane.f32.xlu0 %v137
    %v139 = vpop.xlane.xlu0 %138
    %v140 = vadd.f32 %v73, %v74
    %141 = vadd.xlane.f32.xlu0 %v140
    %v142 = vpop.xlane.xlu0 %141
    %v143 = vadd.f32 %v75, %v76
    %144 = vadd.xlane.f32.xlu0 %v143
    %v145 = vpop.xlane.xlu0 %144
    %v146 = vadd.f32 %v77, %v78
    %147 = vadd.xlane.f32.xlu0 %v146
    %v148 = vpop.xlane.xlu0 %147
    %v149 = vadd.f32 %v79, %v80
    %150 = vadd.xlane.f32.xlu0 %v149
    %v151 = vpop.xlane.xlu0 %150
    %v152 = vadd.f32 %v81, %v82
    %153 = vadd.xlane.f32.xlu0 %v152
    %v154 = vpop.xlane.xlu0 %153
    %v155 = vadd.f32 %v85, 0.0
    %v156 = vadd.f32 %v88, 0.0
    %v157 = vadd.f32 %v91, 0.0
    %v158 = vadd.f32 %v94, 0.0
    %v159 = vadd.f32 %v97, 0.0
    %v160 = vadd.f32 %v100, 0.0
    %v161 = vadd.f32 %v103, 0.0
    %v162 = vadd.f32 %v106, 0.0
    %v163 = vadd.f32 %v109, 0.0
    %v164 = vadd.f32 %v112, 0.0
    %v165 = vadd.f32 %v115, 0.0
    %v166 = vadd.f32 %v118, 0.0
    %v167 = vadd.f32 %v121, 0.0
    %v168 = vadd.f32 %v124, 0.0
    %v169 = vadd.f32 %v127, 0.0
    %v170 = vadd.f32 %v130, 0.0
    %v171 = vadd.f32 %v133, 0.0
    %v172 = vadd.f32 %v136, 0.0
    %v173 = vadd.f32 %v139, 0.0
    %v174 = vadd.f32 %v142, 0.0
    %v175 = vadd.f32 %v145, 0.0
    %v176 = vadd.f32 %v148, 0.0
    %v177 = vadd.f32 %v151, 0.0
    %v178 = vadd.f32 %v154, 0.0
    %v179 = vmul.f32 %v155, 0.00390625
    %v180 = vmul.f32 %v156, 0.00390625
    %v181 = vmul.f32 %v157, 0.00390625
    %v182 = vmul.f32 %v158, 0.00390625
    %v183 = vmul.f32 %v159, 0.00390625
    %v184 = vmul.f32 %v160, 0.00390625
    %v185 = vmul.f32 %v161, 0.00390625
    %v186 = vmul.f32 %v162, 0.00390625
    %v187 = vmul.f32 %v163, 0.00390625
    %v188 = vmul.f32 %v164, 0.00390625
    %v189 = vmul.f32 %v165, 0.00390625
    %v190 = vmul.f32 %v166, 0.00390625
    %v191 = vmul.f32 %v167, 0.00390625
    %v192 = vmul.f32 %v168, 0.00390625
    %v193 = vmul.f32 %v169, 0.00390625
    %v194 = vmul.f32 %v170, 0.00390625
    %v195 = vmul.f32 %v171, 0.00390625
    %v196 = vmul.f32 %v172, 0.00390625
    %v197 = vmul.f32 %v173, 0.00390625
    %v198 = vmul.f32 %v174, 0.00390625
    %v199 = vmul.f32 %v175, 0.00390625
    %v200 = vmul.f32 %v176, 0.00390625
    %v201 = vmul.f32 %v177, 0.00390625
    %v202 = vmul.f32 %v178, 0.00390625
    %v203 = vld [vmem:[%s1] sm:$0xff]
    %v204 = vld [vmem:[%s1 + $0x8] sm:$0xff]
    %v205 = vld [vmem:[%s1 + $0x10] sm:$0xff]
    %v206 = vld [vmem:[%s1 + $0x18] sm:$0xff]
    %v207 = vld [vmem:[%s1 + $0x20] sm:$0xff]
    %v208 = vld [vmem:[%s1 + $0x28] sm:$0xff]
    %v209 = vld [vmem:[%s1 + $0x30] sm:$0xff]
    %v210 = vld [vmem:[%s1 + $0x38] sm:$0xff]
    %v211 = vld [vmem:[%s2] sm:$0x1]
    %v213 = vlaneseq
    %v214 = vshrl.u32 %v213, 7
    %v215 = vsub.s32 0, %v214
    %v216 = vrot.slane %v211, %v215
    %v242 = vlaneseq
    %v243 = vand.u32 %v242, 127
    %v244 = vlaneseq
    %v245 = vshrl.u32 %v244, 7
    %v246 = vsub.s32 %v243, %v245
    %v247 = vrot.slane %v179, %v246
    %v248 = vadd.s32 %v243, 4294967288
    %v249 = vlaneseq
    %v250 = vshrl.u32 %v249, 7
    %v251 = vsub.s32 %v248, %v250
    %v252 = vrot.slane %v180, %v251
    %vm253 = vcmask 130112
    %v254 = vsel %vm253, %v252, %v247
    %v255 = vadd.s32 %v243, 4294967280
    %v256 = vlaneseq
    %v257 = vshrl.u32 %v256, 7
    %v258 = vsub.s32 %v255, %v257
    %v259 = vrot.slane %v181, %v258
    %vm260 = vcmask 195712
    %v261 = vsel %vm260, %v259, %v254
    %v262 = vadd.s32 %v243, 4294967272
    %v263 = vlaneseq
    %v264 = vshrl.u32 %v263, 7
    %v265 = vsub.s32 %v262, %v264
    %v266 = vrot.slane %v182, %v265
    %vm267 = vcmask 261312
    %v268 = vsel %vm267, %v266, %v261
    %v269 = vadd.s32 %v243, 4294967264
    %v270 = vlaneseq
    %v271 = vshrl.u32 %v270, 7
    %v272 = vsub.s32 %v269, %v271
    %v273 = vrot.slane %v183, %v272
    %vm274 = vcmask 326912
    %v275 = vsel %vm274, %v273, %v268
    %v276 = vadd.s32 %v243, 4294967256
    %v277 = vlaneseq
    %v278 = vshrl.u32 %v277, 7
    %v279 = vsub.s32 %v276, %v278
    %v280 = vrot.slane %v184, %v279
    %vm281 = vcmask 392512
    %v282 = vsel %vm281, %v280, %v275
    %v283 = vadd.s32 %v243, 4294967248
    %v284 = vlaneseq
    %v285 = vshrl.u32 %v284, 7
    %v286 = vsub.s32 %v283, %v285
    %v287 = vrot.slane %v185, %v286
    %vm288 = vcmask 458112
    %v289 = vsel %vm288, %v287, %v282
    %v290 = vadd.s32 %v243, 4294967240
    %v291 = vlaneseq
    %v292 = vshrl.u32 %v291, 7
    %v293 = vsub.s32 %v290, %v292
    %v294 = vrot.slane %v186, %v293
    %vm295 = vcmask 523712
    %v296 = vsel %vm295, %v294, %v289
    %v297 = vlaneseq
    %v298 = vshrl.u32 %v297, 7
    %v299 = vsub.s32 %v243, %v298
    %v300 = vrot.slane %v187, %v299
    %v301 = vlaneseq
    %v302 = vshrl.u32 %v301, 7
    %v303 = vsub.s32 %v248, %v302
    %v304 = vrot.slane %v188, %v303
    %v305 = vsel %vm253, %v304, %v300
    %v306 = vlaneseq
    %v307 = vshrl.u32 %v306, 7
    %v308 = vsub.s32 %v255, %v307
    %v309 = vrot.slane %v189, %v308
    %v310 = vsel %vm260, %v309, %v305
    %v311 = vlaneseq
    %v312 = vshrl.u32 %v311, 7
    %v313 = vsub.s32 %v262, %v312
    %v314 = vrot.slane %v190, %v313
    %v315 = vsel %vm267, %v314, %v310
    %v316 = vlaneseq
    %v317 = vshrl.u32 %v316, 7
    %v318 = vsub.s32 %v269, %v317
    %v319 = vrot.slane %v191, %v318
    %v320 = vsel %vm274, %v319, %v315
    %v321 = vlaneseq
    %v322 = vshrl.u32 %v321, 7
    %v323 = vsub.s32 %v276, %v322
    %v324 = vrot.slane %v192, %v323
    %v325 = vsel %vm281, %v324, %v320
    %v326 = vlaneseq
    %v327 = vshrl.u32 %v326, 7
    %v328 = vsub.s32 %v283, %v327
    %v329 = vrot.slane %v193, %v328
    %v330 = vsel %vm288, %v329, %v325
    %v331 = vlaneseq
    %v332 = vshrl.u32 %v331, 7
    %v333 = vsub.s32 %v290, %v332
    %v334 = vrot.slane %v194, %v333
    %v335 = vsel %vm295, %v334, %v330
    %v336 = vlaneseq
    %v337 = vshrl.u32 %v336, 7
    %v338 = vsub.s32 %v243, %v337
    %v339 = vrot.slane %v195, %v338
    %v340 = vlaneseq
    %v341 = vshrl.u32 %v340, 7
    %v342 = vsub.s32 %v248, %v341
    %v343 = vrot.slane %v196, %v342
    %v344 = vsel %vm253, %v343, %v339
    %v345 = vlaneseq
    %v346 = vshrl.u32 %v345, 7
    %v347 = vsub.s32 %v255, %v346
    %v348 = vrot.slane %v197, %v347
    %v349 = vsel %vm260, %v348, %v344
    %v350 = vlaneseq
    %v351 = vshrl.u32 %v350, 7
    %v352 = vsub.s32 %v262, %v351
    %v353 = vrot.slane %v198, %v352
    %v354 = vsel %vm267, %v353, %v349
    %v355 = vlaneseq
    %v356 = vshrl.u32 %v355, 7
    %v357 = vsub.s32 %v269, %v356
    %v358 = vrot.slane %v199, %v357
    %v359 = vsel %vm274, %v358, %v354
    %v360 = vlaneseq
    %v361 = vshrl.u32 %v360, 7
    %v362 = vsub.s32 %v276, %v361
    %v363 = vrot.slane %v200, %v362
    %v364 = vsel %vm281, %v363, %v359
    %v365 = vlaneseq
    %v366 = vshrl.u32 %v365, 7
    %v367 = vsub.s32 %v283, %v366
    %v368 = vrot.slane %v201, %v367
    %v369 = vsel %vm288, %v368, %v364
    %v370 = vlaneseq
    %v371 = vshrl.u32 %v370, 7
    %v372 = vsub.s32 %v290, %v371
    %v373 = vrot.slane %v202, %v372
    %v374 = vsel %vm295, %v373, %v369
    %vm375 = vcmask 1041409
    %v376 = vsel %vm375, %v335, %v296
    %vm377 = vcmask 1042434
    %v378 = vsel %vm377, %v374, %v376
    %vm379 = vcmask 523264
    %v380 = vsel %vm379, %v378, 0
    %382 = vmatprep.subr.mxu0 0.0
    %383 = vmatpush1.msra.mxu0 %v203
    %384 = vmatprep.subr.mxu0 0.0
    %385 = vmatpush1.msra.mxu0 %v204
    %386 = vmatprep.subr.mxu0 0.0
    %387 = vmatpush1.msra.mxu0 %v205
    %388 = vmatprep.subr.mxu0 0.0
    %389 = vmatpush1.msra.mxu0 %v206
    %390 = vmatprep.subr.mxu0 0.0
    %391 = vmatpush1.msra.mxu0 %v207
    %392 = vmatprep.subr.mxu0 0.0
    %393 = vmatpush1.msra.mxu0 %v208
    %394 = vmatprep.subr.mxu0 0.0
    %395 = vmatpush1.msra.mxu0 %v209
    %396 = vmatprep.subr.mxu0 0.0
    %397 = vmatpush1.msra.mxu0 %v210
    %398 = vmatprep.subr.mxu0 0.0
    %399 = vmatpush1.msra.mxu0 0.0
    %400 = vmatprep.subr.mxu0 0.0
    %401 = vmatpush1.msra.mxu0 0.0
    %402 = vmatprep.subr.mxu0 0.0
    %403 = vmatpush1.msra.mxu0 0.0
    %404 = vmatprep.subr.mxu0 0.0
    %405 = vmatpush1.msra.mxu0 0.0
    %406 = vmatprep.subr.mxu0 0.0
    %407 = vmatpush1.msra.mxu0 0.0
    %408 = vmatprep.subr.mxu0 0.0
    %409 = vmatpush1.msra.mxu0 0.0
    %410 = vmatprep.subr.mxu0 0.0
    %411 = vmatpush1.msra.mxu0 0.0
    %412 = vmatprep.subr.mxu0 0.0
    %413 = vmatpush1.msra.mxu0 0.0
    %414 = vmatprep.subr.mxu0 0.0
    %415 = vmatpush1.msra.mxu0 0.0
    %416 = vmatprep.subr.mxu0 0.0
    %417 = vmatpush1.msra.mxu0 0.0
    %418 = vmatprep.subr.mxu0 0.0
    %419 = vmatpush1.msra.mxu0 0.0
    %420 = vmatprep.subr.mxu0 0.0
    %421 = vmatpush1.msra.mxu0 0.0
    %422 = vmatprep.subr.mxu0 0.0
    %423 = vmatpush1.msra.mxu0 0.0
    %424 = vmatprep.subr.mxu0 0.0
    %425 = vmatpush1.msra.mxu0 0.0
    %426 = vmatprep.subr.mxu0 0.0
    %427 = vmatpush1.msra.mxu0 0.0
    %428 = vmatprep.subr.mxu0 0.0
    %429 = vmatpush1.msra.mxu0 0.0
    %430 = vmatprep.subr.mxu0 0.0
    %431 = vmatpush1.msra.mxu0 0.0
    %432 = vmatprep.subr.mxu0 0.0
    %433 = vmatpush1.msra.mxu0 0.0
    %434 = vmatprep.subr.mxu0 0.0
    %435 = vmatpush1.msra.mxu0 0.0
    %436 = vmatprep.subr.mxu0 0.0
    %437 = vmatpush1.msra.mxu0 0.0
    %438 = vmatprep.subr.mxu0 0.0
    %439 = vmatpush1.msra.mxu0 0.0
    %440 = vmatprep.subr.mxu0 0.0
    %441 = vmatpush1.msra.mxu0 0.0
    %442 = vmatprep.subr.mxu0 0.0
    %443 = vmatpush1.msra.mxu0 0.0
    %444 = vmatprep.subr.mxu0 0.0
    %445 = vmatpush1.msra.mxu0 0.0
    %446 = vmatprep.mubr.f32.mxu0 0.0
    %447 = vmatmul.mubr.f32.gmra.mrb[0].mxu0 %v380
    %v448 = vpop.f32.mrb[0].mxu0
    %v449 = vadd.f32 %v216, %v448
    %v450 = vpop.f32.mrb[0].mxu0
    %451 = vdwg.mxu0
    %v452 = vmax.f32 %v449, 0.0
    %v453 = vld [vmem:[%s3] sm:$0xff]
    %v454 = vld [vmem:[%s3 + $0x8] sm:$0xff]
    %v455 = vld [vmem:[%s4] sm:$0x1]
    %v457 = vlaneseq
    %v458 = vshrl.u32 %v457, 7
    %v459 = vsub.s32 0, %v458
    %v460 = vrot.slane %v455, %v459
    %vm462 = vcmask 130048
    %v464 = vsel %vm462, %v452, 0
    %466 = vmatprep.subr.mxu0 0.0
    %467 = vmatpush1.msra.mxu0 %v453
    %468 = vmatprep.subr.mxu0 0.0
    %469 = vmatpush1.msra.mxu0 %v454
    %470 = vmatprep.subr.mxu0 0.0
    %471 = vmatpush1.msra.mxu0 0.0
    %472 = vmatprep.subr.mxu0 0.0
    %473 = vmatpush1.msra.mxu0 0.0
    %474 = vmatprep.subr.mxu0 0.0
    %475 = vmatpush1.msra.mxu0 0.0
    %476 = vmatprep.subr.mxu0 0.0
    %477 = vmatpush1.msra.mxu0 0.0
    %478 = vmatprep.subr.mxu0 0.0
    %479 = vmatpush1.msra.mxu0 0.0
    %480 = vmatprep.subr.mxu0 0.0
    %481 = vmatpush1.msra.mxu0 0.0
    %482 = vmatprep.subr.mxu0 0.0
    %483 = vmatpush1.msra.mxu0 0.0
    %484 = vmatprep.subr.mxu0 0.0
    %485 = vmatpush1.msra.mxu0 0.0
    %486 = vmatprep.subr.mxu0 0.0
    %487 = vmatpush1.msra.mxu0 0.0
    %488 = vmatprep.subr.mxu0 0.0
    %489 = vmatpush1.msra.mxu0 0.0
    %490 = vmatprep.subr.mxu0 0.0
    %491 = vmatpush1.msra.mxu0 0.0
    %492 = vmatprep.subr.mxu0 0.0
    %493 = vmatpush1.msra.mxu0 0.0
    %494 = vmatprep.subr.mxu0 0.0
    %495 = vmatpush1.msra.mxu0 0.0
    %496 = vmatprep.subr.mxu0 0.0
    %497 = vmatpush1.msra.mxu0 0.0
    %498 = vmatprep.subr.mxu0 0.0
    %499 = vmatpush1.msra.mxu0 0.0
    %500 = vmatprep.subr.mxu0 0.0
    %501 = vmatpush1.msra.mxu0 0.0
    %502 = vmatprep.subr.mxu0 0.0
    %503 = vmatpush1.msra.mxu0 0.0
    %504 = vmatprep.subr.mxu0 0.0
    %505 = vmatpush1.msra.mxu0 0.0
    %506 = vmatprep.subr.mxu0 0.0
    %507 = vmatpush1.msra.mxu0 0.0
    %508 = vmatprep.subr.mxu0 0.0
    %509 = vmatpush1.msra.mxu0 0.0
    %510 = vmatprep.subr.mxu0 0.0
    %511 = vmatpush1.msra.mxu0 0.0
    %512 = vmatprep.subr.mxu0 0.0
    %513 = vmatpush1.msra.mxu0 0.0
    %514 = vmatprep.subr.mxu0 0.0
    %515 = vmatpush1.msra.mxu0 0.0
    %516 = vmatprep.subr.mxu0 0.0
    %517 = vmatpush1.msra.mxu0 0.0
    %518 = vmatprep.subr.mxu0 0.0
    %519 = vmatpush1.msra.mxu0 0.0
    %520 = vmatprep.subr.mxu0 0.0
    %521 = vmatpush1.msra.mxu0 0.0
    %522 = vmatprep.subr.mxu0 0.0
    %523 = vmatpush1.msra.mxu0 0.0
    %524 = vmatprep.subr.mxu0 0.0
    %525 = vmatpush1.msra.mxu0 0.0
    %526 = vmatprep.subr.mxu0 0.0
    %527 = vmatpush1.msra.mxu0 0.0
    %528 = vmatprep.subr.mxu0 0.0
    %529 = vmatpush1.msra.mxu0 0.0
    %530 = vmatprep.mubr.f32.mxu0 0.0
    %531 = vmatmul.mubr.f32.gmra.mrb[0].mxu0 %v464
    %v532 = vpop.f32.mrb[0].mxu0
    %v533 = vadd.f32 %v460, %v532
    %v534 = vpop.f32.mrb[0].mxu0
    %535 = vdwg.mxu0
    %v536 = vmul.f32 %v533, 0.16666667
    %v537 = vadd.f32 %v536, 0.5
    %v538 = vmax.f32 %v537, 0.0
    %v539 = vmin.f32 %v538, 1.0
    %v540 = vlaneseq
    %v541 = vshrl.u32 %v540, 7
    %v542 = vsub.s32 0, %v541
    %v543 = vrot.slane %v539, %v542
    %545 = vbcast.lane.b32.xlu0 %v543, 256
    %v546 = vpop.permute.xlu0 %545
    %s548 = sor.u32 256, 8
    %549 = vbcast.lane.b32.xlu0 %v543, %s548
    %v550 = vpop.permute.xlu0 %549
    %s552 = sor.u32 256, 16
    %553 = vbcast.lane.b32.xlu0 %v543, %s552
    %v554 = vpop.permute.xlu0 %553
    %s556 = sor.u32 256, 24
    %557 = vbcast.lane.b32.xlu0 %v543, %s556
    %v558 = vpop.permute.xlu0 %557
    %s560 = sor.u32 256, 32
    %561 = vbcast.lane.b32.xlu0 %v543, %s560
    %v562 = vpop.permute.xlu0 %561
    %s564 = sor.u32 256, 40
    %565 = vbcast.lane.b32.xlu0 %v543, %s564
    %v566 = vpop.permute.xlu0 %565
    %s568 = sor.u32 256, 48
    %569 = vbcast.lane.b32.xlu0 %v543, %s568
    %v570 = vpop.permute.xlu0 %569
    %s572 = sor.u32 256, 56
    %573 = vbcast.lane.b32.xlu0 %v543, %s572
    %v574 = vpop.permute.xlu0 %573
    %v575 = vlaneseq
    %v576 = vshrl.u32 %v575, 7
    %v577 = vsub.s32 1, %v576
    %v578 = vrot.slane %v539, %v577
    %580 = vbcast.lane.b32.xlu0 %v578, 256
    %v581 = vpop.permute.xlu0 %580
    %s583 = sor.u32 256, 8
    %584 = vbcast.lane.b32.xlu0 %v578, %s583
    %v585 = vpop.permute.xlu0 %584
    %s587 = sor.u32 256, 16
    %588 = vbcast.lane.b32.xlu0 %v578, %s587
    %v589 = vpop.permute.xlu0 %588
    %s591 = sor.u32 256, 24
    %592 = vbcast.lane.b32.xlu0 %v578, %s591
    %v593 = vpop.permute.xlu0 %592
    %s595 = sor.u32 256, 32
    %596 = vbcast.lane.b32.xlu0 %v578, %s595
    %v597 = vpop.permute.xlu0 %596
    %s599 = sor.u32 256, 40
    %600 = vbcast.lane.b32.xlu0 %v578, %s599
    %v601 = vpop.permute.xlu0 %600
    %s603 = sor.u32 256, 48
    %604 = vbcast.lane.b32.xlu0 %v578, %s603
    %v605 = vpop.permute.xlu0 %604
    %s607 = sor.u32 256, 56
    %608 = vbcast.lane.b32.xlu0 %v578, %s607
    %v609 = vpop.permute.xlu0 %608
    %v610 = vlaneseq
    %v611 = vshrl.u32 %v610, 7
    %v612 = vsub.s32 2, %v611
    %v613 = vrot.slane %v539, %v612
    %615 = vbcast.lane.b32.xlu0 %v613, 256
    %v616 = vpop.permute.xlu0 %615
    %s618 = sor.u32 256, 8
    %619 = vbcast.lane.b32.xlu0 %v613, %s618
    %v620 = vpop.permute.xlu0 %619
    %s622 = sor.u32 256, 16
    %623 = vbcast.lane.b32.xlu0 %v613, %s622
    %v624 = vpop.permute.xlu0 %623
    %s626 = sor.u32 256, 24
    %627 = vbcast.lane.b32.xlu0 %v613, %s626
    %v628 = vpop.permute.xlu0 %627
    %s630 = sor.u32 256, 32
    %631 = vbcast.lane.b32.xlu0 %v613, %s630
    %v632 = vpop.permute.xlu0 %631
    %s634 = sor.u32 256, 40
    %635 = vbcast.lane.b32.xlu0 %v613, %s634
    %v636 = vpop.permute.xlu0 %635
    %s638 = sor.u32 256, 48
    %639 = vbcast.lane.b32.xlu0 %v613, %s638
    %v640 = vpop.permute.xlu0 %639
    %s642 = sor.u32 256, 56
    %643 = vbcast.lane.b32.xlu0 %v613, %s642
    %v644 = vpop.permute.xlu0 %643
    %v645 = vmul.f32 %v35, %v546
    %v646 = vmul.f32 %v36, %v546
    %v647 = vmul.f32 %v37, %v550
    %v648 = vmul.f32 %v38, %v550
    %v649 = vmul.f32 %v39, %v554
    %v650 = vmul.f32 %v40, %v554
    %v651 = vmul.f32 %v41, %v558
    %v652 = vmul.f32 %v42, %v558
    %v653 = vmul.f32 %v43, %v562
    %v654 = vmul.f32 %v44, %v562
    %v655 = vmul.f32 %v45, %v566
    %v656 = vmul.f32 %v46, %v566
    %v657 = vmul.f32 %v47, %v570
    %v658 = vmul.f32 %v48, %v570
    %v659 = vmul.f32 %v49, %v574
    %v660 = vmul.f32 %v50, %v574
    %v661 = vmul.f32 %v51, %v581
    %v662 = vmul.f32 %v52, %v581
    %v663 = vmul.f32 %v53, %v585
    %v664 = vmul.f32 %v54, %v585
    %v665 = vmul.f32 %v55, %v589
    %v666 = vmul.f32 %v56, %v589
    %v667 = vmul.f32 %v57, %v593
    %v668 = vmul.f32 %v58, %v593
    %v669 = vmul.f32 %v59, %v597
    %v670 = vmul.f32 %v60, %v597
    %v671 = vmul.f32 %v61, %v601
    %v672 = vmul.f32 %v62, %v601
    %v673 = vmul.f32 %v63, %v605
    %v674 = vmul.f32 %v64, %v605
    %v675 = vmul.f32 %v65, %v609
    %v676 = vmul.f32 %v66, %v609
    %v677 = vmul.f32 %v67, %v616
    %v678 = vmul.f32 %v68, %v616
    %v679 = vmul.f32 %v69, %v620
    %v680 = vmul.f32 %v70, %v620
    %v681 = vmul.f32 %v71, %v624
    %v682 = vmul.f32 %v72, %v624
    %v683 = vmul.f32 %v73, %v628
    %v684 = vmul.f32 %v74, %v628
    %v685 = vmul.f32 %v75, %v632
    %v686 = vmul.f32 %v76, %v632
    %v687 = vmul.f32 %v77, %v636
    %v688 = vmul.f32 %v78, %v636
    %v689 = vmul.f32 %v79, %v640
    %v690 = vmul.f32 %v80, %v640
    %v691 = vmul.f32 %v81, %v644
    %v692 = vmul.f32 %v82, %v644
    %693 = vst [vmem:[#allocation5] sm:$0xff] %v645
    %694 = vst [vmem:[#allocation5 + $0x8] sm:$0xff] %v646
    %695 = vst [vmem:[#allocation5 + $0x10] sm:$0xff] %v647
    %696 = vst [vmem:[#allocation5 + $0x18] sm:$0xff] %v648
    %697 = vst [vmem:[#allocation5 + $0x20] sm:$0xff] %v649
    %698 = vst [vmem:[#allocation5 + $0x28] sm:$0xff] %v650
    %699 = vst [vmem:[#allocation5 + $0x30] sm:$0xff] %v651
    %700 = vst [vmem:[#allocation5 + $0x38] sm:$0xff] %v652
    %701 = vst [vmem:[#allocation5 + $0x40] sm:$0xff] %v653
    %702 = vst [vmem:[#allocation5 + $0x48] sm:$0xff] %v654
    %703 = vst [vmem:[#allocation5 + $0x50] sm:$0xff] %v655
    %704 = vst [vmem:[#allocation5 + $0x58] sm:$0xff] %v656
    %705 = vst [vmem:[#allocation5 + $0x60] sm:$0xff] %v657
    %706 = vst [vmem:[#allocation5 + $0x68] sm:$0xff] %v658
    %707 = vst [vmem:[#allocation5 + $0x70] sm:$0xff] %v659
    %708 = vst [vmem:[#allocation5 + $0x78] sm:$0xff] %v660
    %709 = vst [vmem:[#allocation5 + $0x80] sm:$0xff] %v661
    %710 = vst [vmem:[#allocation5 + $0x88] sm:$0xff] %v662
    %711 = vst [vmem:[#allocation5 + $0x90] sm:$0xff] %v663
    %712 = vst [vmem:[#allocation5 + $0x98] sm:$0xff] %v664
    %713 = vst [vmem:[#allocation5 + $0xa0] sm:$0xff] %v665
    %714 = vst [vmem:[#allocation5 + $0xa8] sm:$0xff] %v666
    %715 = vst [vmem:[#allocation5 + $0xb0] sm:$0xff] %v667
    %716 = vst [vmem:[#allocation5 + $0xb8] sm:$0xff] %v668
    %717 = vst [vmem:[#allocation5 + $0xc0] sm:$0xff] %v669
    %718 = vst [vmem:[#allocation5 + $0xc8] sm:$0xff] %v670
    %719 = vst [vmem:[#allocation5 + $0xd0] sm:$0xff] %v671
    %720 = vst [vmem:[#allocation5 + $0xd8] sm:$0xff] %v672
    %721 = vst [vmem:[#allocation5 + $0xe0] sm:$0xff] %v673
    %722 = vst [vmem:[#allocation5 + $0xe8] sm:$0xff] %v674
    %723 = vst [vmem:[#allocation5 + $0xf0] sm:$0xff] %v675
    %724 = vst [vmem:[#allocation5 + $0xf8] sm:$0xff] %v676
    %725 = vst [vmem:[#allocation5 + $0x100] sm:$0xff] %v677
    %726 = vst [vmem:[#allocation5 + $0x108] sm:$0xff] %v678
    %727 = vst [vmem:[#allocation5 + $0x110] sm:$0xff] %v679
    %728 = vst [vmem:[#allocation5 + $0x118] sm:$0xff] %v680
    %729 = vst [vmem:[#allocation5 + $0x120] sm:$0xff] %v681
    %730 = vst [vmem:[#allocation5 + $0x128] sm:$0xff] %v682
    %731 = vst [vmem:[#allocation5 + $0x130] sm:$0xff] %v683
    %732 = vst [vmem:[#allocation5 + $0x138] sm:$0xff] %v684
    %733 = vst [vmem:[#allocation5 + $0x140] sm:$0xff] %v685
    %734 = vst [vmem:[#allocation5 + $0x148] sm:$0xff] %v686
    %735 = vst [vmem:[#allocation5 + $0x150] sm:$0xff] %v687
    %736 = vst [vmem:[#allocation5 + $0x158] sm:$0xff] %v688
    %737 = vst [vmem:[#allocation5 + $0x160] sm:$0xff] %v689
    %738 = vst [vmem:[#allocation5 + $0x168] sm:$0xff] %v690
    %739 = vst [vmem:[#allocation5 + $0x170] sm:$0xff] %v691
    %740 = vst [vmem:[#allocation5 + $0x178] sm:$0xff] %v692
    // Predicated region
    $region26: #{tpu_custom_call.1} parent=1 // pred_check
      _
    $region27: #{tpu_custom_call.1} parent=1 // pred_check_branch
      %742 = sbr.rel (0) target = $region29
    $region28: #{tpu_custom_call.1} parent=1 // pred_region
      %s744 = ssub.s32 6144, 6144
      %745 = vsyncadd [#allocation4], %s744
      %s746 = sshll.u32 [#allocation5], 4
      %s747 = int_to_ptr.vmem [resolvable:$true] %s746
      %752 = dma.vmem_to_hbm [thread:$0]  %s747, 6144, %s5, [#allocation4], 256, 256, 16
    $region29: #{tpu_custom_call.1} parent=1 // pred_fallthru
      _
    // Predicated region
    $region30: #{tpu_custom_call.1} parent=1 // pred_check
      _
    $region31: #{tpu_custom_call.1} parent=1 // pred_check_branch
      %754 = sbr.rel (0) target = $region33
    $region32: #{tpu_custom_call.1} parent=1 // pred_region
      %755 = dma.done [#allocation4], 6144
    $region33: #{tpu_custom_call.1} parent=1 // pred_fallthru
      _
    %756 = vsyncpa [#allocation3], 1
    %757 = vsyncpa [#allocation4], 1

</llo_original>
